<compile_context>
chip_gen: v5e
topology: v5e:2x2
jax: 0.10.0
libtpu: 0.0.40
codegen_flags: <defaults>
</compile_context>

<pallas_src>
import numpy as np
import jax
import jax.numpy as jnp
from jax.experimental import pallas as pl
from jax.experimental.pallas import tpu as pltpu

NUM_CLASSES = 2
LANE = 128          # lane width; classifier N dim padded to this
NEG_BIG = -1e30     # bias padding so padded lanes vanish in softmax


def _round_up(x, m):
    return ((x + m - 1) // m) * m


def _defect_head_kernel(vec_ref, w_ref, b_ref, prob_ref):
    # vec_ref : (TB, H)    gathered EOS-row hidden states (f32)
    # w_ref   : (H, 128)   classifier weight, lane-padded (cols >=2 are zero)
    # b_ref   : (1, 128)   classifier bias, lanes >=2 are -1e30
    # prob_ref: (TB, 128)  softmax probabilities (lanes >=2 underflow to 0)
    logits = jnp.dot(vec_ref[...], w_ref[...],
                     preferred_element_type=jnp.float32) + b_ref[...]
    m = jnp.max(logits, axis=-1, keepdims=True)
    e = jnp.exp(logits - m)
    denom = jnp.sum(e, axis=-1, keepdims=True)
    prob_ref[...] = e / denom          # exact divide: (TB,1) denom is cheap


def init_defect_head_params(w, b):
    """Pad the nn.Linear(H, 2) params once (init-time); reuse every forward.

    Padded weight columns are zero; padded bias lanes are -1e30 so that the
    softmax over 128 lanes equals the softmax over the 2 real classes.
    """
    H = w.shape[0]
    w_pad = jnp.zeros((H, LANE), jnp.float32).at[:, :NUM_CLASSES].set(
        w.astype(jnp.float32))
    b_pad = jnp.full((1, LANE), NEG_BIG, jnp.float32).at[0, :NUM_CLASSES].set(
        b.astype(jnp.float32))
    return w_pad, b_pad


def defect_model_forward(source_ids, hidden_states, w_pad, b_pad, eos_token_id,
                         labels=None, validate=False, max_tb=256):
    """Pallas implementation of DefectModel.forward (post-encoder part).

    source_ids:    [B, S] int32
    hidden_states: [B, S, H] float (last decoder hidden states, synthetic)
    w_pad, b_pad:  outputs of init_defect_head_params
    Returns prob [B, 2] (and loss if labels given), matching the PyTorch module.
    """
    B, S = source_ids.shape
    H = hidden_states.shape[-1]

    if validate:
        # Debug-only: mirrors the ValueError in the PyTorch module.  Forces a
        # device->host sync, so keep it out of the hot path / any jit.
        counts = np.asarray(jnp.sum(source_ids == eos_token_id, axis=1))
        if len(np.unique(counts)) > 1:
            raise ValueError(
                "All examples must have the same number of <eos> tokens.")

    # Last EOS position per row (tiny [B, S] reduce in XLA), then gather only
    # those rows: hot-path HBM traffic on hidden_states is O(B*H), not O(B*S*H).
    pos = jnp.arange(S, dtype=jnp.int32)[None, :]
    eos_mask = source_ids == eos_token_id
    last_pos = jnp.max(jnp.where(eos_mask, pos, -1), axis=1).astype(jnp.int32)
    # NOTE: rows with no EOS are clamped to position 0 (PyTorch would error);
    # behavioral divergence documented for callers.
    last_pos = jnp.maximum(last_pos, 0)
    vec = jnp.take_along_axis(
        hidden_states, last_pos[:, None, None], axis=1)[:, 0, :]   # [B, H]
    vec = vec.astype(jnp.float32)

    # Batch tile: multiple of 8 (f32 sublane), capped at max_tb (256 matches
    # the v6e/v7x MXU M tile; also fine on v5e — two MXU passes).
    TB = min(max_tb, _round_up(B, 8))
    B_pad = _round_up(B, TB)
    if B_pad != B:
        vec = jnp.pad(vec, ((0, B_pad - B), (0, 0)))
    n_tiles = B_pad // TB

    cost = pl.CostEstimate(
        flops=2 * B_pad * H * LANE,
        transcendentals=B_pad * LANE,
        bytes_accessed=B_pad * H * 4 + H * LANE * 4 + LANE * 4
        + B_pad * LANE * 4,
    )

    prob_pad = pl.pallas_call(
        _defect_head_kernel,
        grid_spec=pltpu.PrefetchScalarGridSpec(
            num_scalar_prefetch=0,
            grid=(n_tiles,),
            in_specs=[
                pl.BlockSpec((TB, H), lambda i: (i, 0)),
                # Constant block index -> weight/bias stay resident in VMEM.
                pl.BlockSpec((H, LANE), lambda i: (0, 0)),
                pl.BlockSpec((1, LANE), lambda i: (0, 0)),
            ],
            out_specs=pl.BlockSpec((TB, LANE), lambda i: (i, 0)),
        ),
        out_shape=jax.ShapeDtypeStruct((B_pad, LANE), jnp.float32),
        compiler_params=pltpu.CompilerParams(
            dimension_semantics=("parallel",)),
        cost_estimate=cost,
    )(vec, w_pad, b_pad)

    prob = prob_pad[:B, :NUM_CLASSES]

    if labels is not None:
        # CrossEntropyLoss(logits, labels) == -mean(log softmax(logits)[label])
        # == -mean(log prob[label]) (exact softmax in the kernel).
        picked = jnp.take_along_axis(prob, labels[:, None], axis=1)[:, 0]
        loss = -jnp.mean(jnp.log(picked))
        return loss, prob
    return prob


if __name__ == "__main__":
    # Small, deterministic synthetic setup.
    B, S, H = 2, 8, 32
    PAD_ID = 1
    EOS_ID = 2

    key = jax.random.PRNGKey(0)
    k_hid, k_w, k_b = jax.random.split(key, 3)

    # Synthetic "last decoder hidden states" from the (external) PLBART encoder.
    hidden_states = jax.random.normal(k_hid, (B, S, H), dtype=jnp.float32)

    # source_ids: each row has exactly one EOS token (same count per row),
    # followed by PAD tokens.
    source_ids = np.full((B, S), 5, dtype=np.int32)
    source_ids[0, 5] = EOS_ID
    source_ids[0, 6:] = PAD_ID
    source_ids[1, 6] = EOS_ID
    source_ids[1, 7:] = PAD_ID
    source_ids = jnp.asarray(source_ids)

    # Classifier parameters (nn.Linear(hidden_size, 2)), deterministic init.
    w = jax.random.normal(k_w, (H, 2), dtype=jnp.float32) * 0.02
    b = jax.random.normal(k_b, (2,), dtype=jnp.float32) * 0.02
    # Init-time padding (done once, reused across forward calls).
    w_pad, b_pad = init_defect_head_params(w, b)

    labels = jnp.asarray(np.array([0, 1], dtype=np.int32))

    # Run without labels (returns prob) and with labels (returns loss, prob).
    prob = defect_model_forward(source_ids, hidden_states, w_pad, b_pad, EOS_ID,
                                validate=True)
    loss, prob2 = defect_model_forward(source_ids, hidden_states, w_pad, b_pad,
                                       EOS_ID, labels=labels)
    jax.block_until_ready((prob, loss, prob2))

    # Lightweight reference check in plain numpy (same math, no Pallas).
    eos_mask_np = np.asarray(source_ids) == EOS_ID
    hs = np.asarray(hidden_states)
    vec_ref = np.stack([hs[i][eos_mask_np[i]][-1] for i in range(B)], axis=0)
    logits_ref = vec_ref @ np.asarray(w) + np.asarray(b)
    e = np.exp(logits_ref - logits_ref.max(axis=1, keepdims=True))
    prob_ref = e / e.sum(axis=1, keepdims=True)
    loss_ref = -np.mean(
        np.log(prob_ref[np.arange(B), np.asarray(labels)]))

    np.testing.assert_allclose(np.asarray(prob), prob_ref, rtol=1e-5, atol=1e-5)
    np.testing.assert_allclose(np.asarray(prob2), prob_ref, rtol=1e-5, atol=1e-5)
    np.testing.assert_allclose(np.asarray(loss), loss_ref, rtol=1e-5, atol=1e-5)

    print("KERNEL_OK")
</pallas_src>

<mosaic_0001>
module attributes {stable_mosaic.version = 11 : i64} {
  func.func @_defect_head_kernel(%arg0: i32, %arg1: memref<8x32xf32, #tpu.memory_space<vmem>>, %arg2: memref<32x128xf32, #tpu.memory_space<vmem>>, %arg3: memref<1x128xf32, #tpu.memory_space<vmem>>, %arg4: memref<8x128xf32, #tpu.memory_space<vmem>>) attributes {dimension_semantics = [#tpu.dimension_semantics<parallel>], iteration_bounds = array<i64: 1>, scalar_prefetch = 0 : i64, scratch_operands = 0 : i64, tpu.core_type = #tpu.core_type<tc>, window_params = [{transform_indices = @transform_0, window_bounds = array<i64: 8, 32>}, {pipeline_mode = #tpu.pipeline_mode<synchronous>, transform_indices = @transform_1, window_bounds = array<i64: 32, 128>}, {pipeline_mode = #tpu.pipeline_mode<synchronous>, transform_indices = @transform_2, window_bounds = array<i64: 1, 128>}, {transform_indices = @transform_3, window_bounds = array<i64: 8, 128>}]} {
    %c0 = arith.constant 0 : index
    %c0_0 = arith.constant 0 : index
    %0 = vector.load %arg1[%c0, %c0_0] : memref<8x32xf32, #tpu.memory_space<vmem>>, vector<8x32xf32>
    %c0_1 = arith.constant 0 : index
    %c0_2 = arith.constant 0 : index
    %1 = vector.load %arg2[%c0_1, %c0_2] : memref<32x128xf32, #tpu.memory_space<vmem>>, vector<32x128xf32>
    %cst = arith.constant dense<0.000000e+00> : vector<8x128xf32>
    %2 = tpu.matmul %0, %1, %cst {dimension_numbers = #tpu.dot_dimension_numbers<[1], [0], [0], [1], [0, 0, 1, 1], [], []>} : vector<8x32xf32>, vector<32x128xf32>, vector<8x128xf32> -> vector<8x128xf32>
    %c0_3 = arith.constant 0 : index
    %c0_4 = arith.constant 0 : index
    %3 = vector.load %arg3[%c0_3, %c0_4] : memref<1x128xf32, #tpu.memory_space<vmem>>, vector<1x128xf32>
    %4 = vector.broadcast %3 : vector<1x128xf32> to vector<8x128xf32>
    %5 = arith.addf %2, %4 : vector<8x128xf32>
    %cst_5 = arith.constant dense<0xFF800000> : vector<8xf32>
    %6 = vector.multi_reduction <maximumf>, %5, %cst_5 [1] : vector<8x128xf32> to vector<8xf32>
    %7 = vector.shape_cast %6 : vector<8xf32> to vector<8x1xf32>
    %8 = vector.broadcast %7 : vector<8x1xf32> to vector<8x128xf32>
    %9 = arith.subf %5, %8 : vector<8x128xf32>
    %10 = math.exp %9 : vector<8x128xf32>
    %cst_6 = arith.constant dense<0.000000e+00> : vector<8xf32>
    %11 = vector.multi_reduction <add>, %10, %cst_6 [1] : vector<8x128xf32> to vector<8xf32>
    %12 = vector.shape_cast %11 : vector<8xf32> to vector<8x1xf32>
    %13 = vector.broadcast %12 : vector<8x1xf32> to vector<8x128xf32>
    %14 = arith.divf %10, %13 : vector<8x128xf32>
    %c0_7 = arith.constant 0 : index
    %c0_8 = arith.constant 0 : index
    %15 = vector.load %arg4[%c0_7, %c0_8] : memref<8x128xf32, #tpu.memory_space<vmem>>, vector<8x128xf32>
    tpu.vector_store %arg4[%c0_7, %c0_8], %14 {strides = array<i32>} : memref<8x128xf32, #tpu.memory_space<vmem>>, vector<8x128xf32>,
    return
  }
  func.func @transform_0(%arg0: i32) -> (i32, i32) {
    %c0_i32 = arith.constant 0 : i32
    %c0_i32_0 = arith.constant 0 : i32
    return %arg0, %c0_i32 : i32, i32
  }
  func.func @transform_1(%arg0: i32) -> (i32, i32) {
    %c0_i32 = arith.constant 0 : i32
    %c0_i32_0 = arith.constant 0 : i32
    %c0_i32_1 = arith.constant 0 : i32
    return %c0_i32, %c0_i32_0 : i32, i32
  }
  func.func @transform_2(%arg0: i32) -> (i32, i32) {
    %c0_i32 = arith.constant 0 : i32
    %c0_i32_0 = arith.constant 0 : i32
    %c0_i32_1 = arith.constant 0 : i32
    return %c0_i32, %c0_i32_0 : i32, i32
  }
  func.func @transform_3(%arg0: i32) -> (i32, i32) {
    %c0_i32 = arith.constant 0 : i32
    %c0_i32_0 = arith.constant 0 : i32
    return %arg0, %c0_i32 : i32, i32
  }
}

</mosaic_0001>

<llo_original>
// kernel: tpu_custom_call.1
$region0: #{tpu_custom_call.1}
  #allocation0 [shape = 'u32[]', space=smem, size = 0x4, offset = 0x4, fixed_abs, tag = 'smem constant byte address 0x4 - core index']
  #allocation1 [shape = 'u32[72,128]{1,0:T(1,128)}', space=vmem, size = 0x9000, scoped, tag = 'internal scratch']
  %s0 = inlined_call_operand.hbm [shape: f32[8,32], index: 0, kind: input, shape index: {}]
  %s1 = inlined_call_operand.hbm [shape: f32[32,128], index: 1, kind: input, shape index: {}]
  %s2 = inlined_call_operand.vmem [shape: f32[1,128], index: 2, kind: input, shape index: {}]
  %s3 = inlined_call_operand.hbm [shape: f32[8,128], index: 3, kind: output, shape index: {}]
  %s4 = sld [smem:[#allocation0]]
  $region30: #{tpu_custom_call.1} parent=0
    _
  %s6 = ssub.s32 1, %s4
  %s7 = scalar_select 0, %s6, %s4
  $region1: #{tpu_custom_call.1} parent=0
    #allocation2 [shape = 'u8[4096]{0}', space=vmem, size = 0x1000, scoped, tag = 'input window, operand 0, single buffered']
    #allocation3 [shape = 's32[1]{0}', space=sflag, size = 0x4, scoped, tag = 'scoped memory for tpu_custom_call.1']
    #allocation4 [shape = 's32[1]{0}', space=sflag, size = 0x4, scoped, tag = 'scoped memory for tpu_custom_call.1']
    #allocation5 [shape = 'u8[16384]{0}', space=vmem, size = 0x4000, scoped, tag = 'input window, operand 1, single buffered']
    #allocation6 [shape = 's32[1]{0}', space=sflag, size = 0x4, scoped, tag = 'scoped memory for tpu_custom_call.1']
    #allocation7 [shape = 'u8[4096]{0}', space=vmem, size = 0x1000, scoped, tag = 'output window, operand 0, single buffered']
    %8 = vsyncpa [#allocation3], 0
    %9 = vsyncpa [#allocation6], 0
    %10 = vsyncpa [#allocation4], 0
    // Predicated region
    $region2: #{tpu_custom_call.1} parent=1 // pred_check
      _
    $region3: #{tpu_custom_call.1} parent=1 // pred_check_branch
      %12 = sbr.rel (0) target = $region5
    $region4: #{tpu_custom_call.1} parent=1 // pred_region
      %14 = vsyncadd [#allocation3], 0
      %s16 = sshll.u32 %s0, 4
      %s17 = int_to_ptr.hbm [resolvable:$true] %s16
      %s18 = sshll.u32 [#allocation2], 4
      %s19 = int_to_ptr.vmem [resolvable:$true] %s18
      %21 = dma.hbm_to_vmem [thread:$0]  %s17, 128, %s19, [#allocation3]
    $region5: #{tpu_custom_call.1} parent=1 // pred_fallthru
      _
    // Predicated region
    $region6: #{tpu_custom_call.1} parent=1 // pred_check
      _
    $region7: #{tpu_custom_call.1} parent=1 // pred_check_branch
      %23 = sbr.rel (0) target = $region9
    $region8: #{tpu_custom_call.1} parent=1 // pred_region
      %25 = vsyncadd [#allocation6], 0
      %s26 = sshll.u32 %s1, 4
      %s27 = int_to_ptr.hbm [resolvable:$true] %s26
      %s28 = sshll.u32 [#allocation5], 4
      %s29 = int_to_ptr.vmem [resolvable:$true] %s28
      %34 = dma.hbm_to_vmem [thread:$0]  %s27, 512, %s29, [#allocation6], 128, 128, 8
    $region9: #{tpu_custom_call.1} parent=1 // pred_fallthru
      _
    // Predicated region
    $region10: #{tpu_custom_call.1} parent=1 // pred_check
      _
    $region11: #{tpu_custom_call.1} parent=1 // pred_check_branch
      %36 = sbr.rel (0) target = $region13
    $region12: #{tpu_custom_call.1} parent=1 // pred_region
      _
    $region13: #{tpu_custom_call.1} parent=1 // pred_fallthru
      _
    // Predicated region
    $region14: #{tpu_custom_call.1} parent=1 // pred_check
      _
    $region15: #{tpu_custom_call.1} parent=1 // pred_check_branch
      %38 = sbr.rel (0) target = $region17
    $region16: #{tpu_custom_call.1} parent=1 // pred_region
      %40 = dma.done [#allocation3], 128
    $region17: #{tpu_custom_call.1} parent=1 // pred_fallthru
      _
    // Predicated region
    $region18: #{tpu_custom_call.1} parent=1 // pred_check
      _
    $region19: #{tpu_custom_call.1} parent=1 // pred_check_branch
      %42 = sbr.rel (0) target = $region21
    $region20: #{tpu_custom_call.1} parent=1 // pred_region
      %44 = dma.done [#allocation6], 512
    $region21: #{tpu_custom_call.1} parent=1 // pred_fallthru
      _
    %v45 = vld [vmem:[#allocation2] sm:$0xff]
    %v46 = vld [vmem:[#allocation5] sm:$0xff]
    %v47 = vld [vmem:[#allocation5 + $0x8] sm:$0xff]
    %v48 = vld [vmem:[#allocation5 + $0x10] sm:$0xff]
    %v49 = vld [vmem:[#allocation5 + $0x18] sm:$0xff]
    %v50 = vld [vmem:[%s2] sm:$0x1]
    %v52 = vperm.slane %v50, 0
    %vm54 = vcmask 261120
    %v56 = vsel %vm54, %v45, 0
    %58 = vmatpush.msra.mxu0 0.0
    %59 = vmatpush.msra.mxu0 0.0
    %60 = vmatpush.msra.mxu0 0.0
    %61 = vmatpush.msra.mxu0 0.0
    %62 = vmatpush.msra.mxu0 0.0
    %63 = vmatpush.msra.mxu0 0.0
    %64 = vmatpush.msra.mxu0 0.0
    %65 = vmatpush.msra.mxu0 0.0
    %66 = vmatpush.msra.mxu0 0.0
    %67 = vmatpush.msra.mxu0 0.0
    %68 = vmatpush.msra.mxu0 0.0
    %69 = vmatpush.msra.mxu0 0.0
    %70 = vmatpush.msra.mxu0 %v49
    %71 = vmatpush.msra.mxu0 %v48
    %72 = vmatpush.msra.mxu0 %v47
    %73 = vmatpush.msra.mxu0 %v46
    %74 = vmatmul.f32.gmra.mxu0 %v56
    %v75 = vpop.f32.mrf.mxu0
    %v76 = vadd.f32 %v52, %v75
    %77 = vdwg.mxu0
    %78 = vmax.xlane.f32.xlu0 %v76
    %v79 = vpop.xlane.xlu0 %78
    %v80 = vsub.f32 %v76, %v79
    %v81 = vmul.f32 %v80, 1.442695
    %v82 = vpow.pop %v81
    %83 = vadd.xlane.f32.xlu0 %v82
    %v84 = vpop.xlane.xlu0 %83
    %v85 = vrcp.pop %v84
    %v86 = vmul.f32 %v84, %v85
    %v87 = vsub.f32 1.0, %v86
    %v88 = vmul.f32 %v85, %v87
    %v89 = vadd.f32 %v85, %v88
    %vm90 = vweird.f32 %v84
    %vm91 = vweird.f32 %v85
    %vm92 = vmor %vm90, %vm91
    %v93 = vsel %vm92, %v85, %v89
    %v94 = vand.u32 2147483647, %v84
    %vm95 = vcmp.eq.f32.partialorder %v94, 8.507059e+37
    %v96 = vand.u32 %v84, 2147483648
    %v97 = vor.u32 1.1754944e-38, %v96
    %v98 = vsel %vm95, %v97, %v93
    %v99 = vmul.f32 %v82, %v98
    %100 = vst [vmem:[#allocation7] sm:$0xff] %v99
    // Predicated region
    $region22: #{tpu_custom_call.1} parent=1 // pred_check
      _
    $region23: #{tpu_custom_call.1} parent=1 // pred_check_branch
      %102 = sbr.rel (0) target = $region25
    $region24: #{tpu_custom_call.1} parent=1 // pred_region
      %104 = vsyncadd [#allocation4], 0
      %s106 = sshll.u32 [#allocation7], 4
      %s107 = int_to_ptr.vmem [resolvable:$true] %s106
      %s108 = sshll.u32 %s3, 4
      %s109 = int_to_ptr.hbm [resolvable:$true] %s108
      %111 = dma.vmem_to_hbm [thread:$0]  %s107, 128, %s109, [#allocation4]
    $region25: #{tpu_custom_call.1} parent=1 // pred_fallthru
      _
    // Predicated region
    $region26: #{tpu_custom_call.1} parent=1 // pred_check
      _
    $region27: #{tpu_custom_call.1} parent=1 // pred_check_branch
      %113 = sbr.rel (0) target = $region29
    $region28: #{tpu_custom_call.1} parent=1 // pred_region
      %115 = dma.done [#allocation4], 128
    $region29: #{tpu_custom_call.1} parent=1 // pred_fallthru
      _
    %116 = vsyncpa [#allocation3], 1
    %117 = vsyncpa [#allocation6], 1
    %118 = vsyncpa [#allocation4], 1

</llo_original>
